<compile_context>
chip_gen: v7x
topology: tpu7x:2x2x1
jax: 0.10.0
libtpu: 0.0.40
codegen_flags: <defaults>
</compile_context>

<pallas_src>
import functools
import math

import jax
import jax.numpy as jnp
from jax import lax
from jax.experimental import pallas as pl
from jax.experimental.pallas import tpu as pltpu

N_EMBD = 64
BLOCK_SIZE = 128   # max seq len supported by the causal mask (matches the module)
DROPOUT_P = 0.4


def _head_kernel(x_ref, wqkv_ref, keep_ref, o_ref, *, head_size, dropout_p):
    # x_ref: (Bb, T, C) bf16 | wqkv_ref: (C, 3H) bf16 | keep_ref: (Bb, T, T) f32
    # o_ref: (Bb, T, H) f32
    Bb, T, C = x_ref.shape
    H = head_size

    # Fused QKV projection on a (Bb*T, C) slab: one MXU pass instead of three,
    # bf16 operands, f32 accumulation.
    x2d = x_ref[...].reshape(Bb * T, C)
    qkv = jnp.dot(x2d, wqkv_ref[...], preferred_element_type=jnp.float32)   # (Bb*T, 3H)
    q = qkv[:, 0 * H:1 * H].reshape(Bb, T, H)
    k = qkv[:, 1 * H:2 * H].reshape(Bb, T, H)
    v = qkv[:, 2 * H:3 * H].reshape(Bb, T, H)

    # Scaled QK^T expressed as a batched contraction (no materialized k.T).
    scale = 1.0 / math.sqrt(H)
    scores = jnp.einsum(
        "bqd,bkd->bqk",
        q.astype(jnp.bfloat16), k.astype(jnp.bfloat16),
        preferred_element_type=jnp.float32) * scale                          # (Bb, T, T)

    # Causal mask == tril[:T, :T].bool(); large finite negative keeps exp() NaN-safe.
    row = lax.broadcasted_iota(jnp.int32, (T, T), 0)
    col = lax.broadcasted_iota(jnp.int32, (T, T), 1)
    causal = (col <= row)[None, :, :]
    scores = jnp.where(causal, scores, jnp.float32(-1e30))

    # Softmax over the key axis (f32).
    m = jnp.max(scores, axis=-1, keepdims=True)
    p = jnp.exp(scores - m)
    denom = jnp.sum(p, axis=-1, keepdims=True)

    # Dropout on the attention weights (inverted scaling), matching
    # F.scaled_dot_product_attention(..., dropout_p=dropout).  The 1/(1-p)
    # scale is folded into the softmax normalization: w = p * keep / ((1-p)*denom).
    inv = (1.0 / (1.0 - dropout_p)) / denom                                  # (Bb, T, 1)
    w = p * keep_ref[...] * inv

    out = jnp.einsum(
        "bqk,bkd->bqd",
        w.astype(jnp.bfloat16), v.astype(jnp.bfloat16),
        preferred_element_type=jnp.float32)                                  # (Bb, T, H)
    o_ref[...] = out.astype(o_ref.dtype)


def head_forward(x, w_key, w_query, w_value, *, dropout_p=DROPOUT_P,
                 rng_key=None, batch_block=8):
    """x: (B, T, C) float32; w_*: (head_size, n_embd) like nn.Linear.weight."""
    B, T, C = x.shape
    H = w_key.shape[0]
    assert T <= BLOCK_SIZE and C == N_EMBD

    # Batch block per grid step: amortizes the ~0.35 us/step grid overhead and
    # gives the MXU/DMA much larger tiles.  Pick the largest divisor of B <= batch_block.
    Bb = max(1, min(batch_block, B))
    while B % Bb:
        Bb -= 1

    # nn.Linear computes x @ W.T; fuse the three (C, H) transposed weights into
    # one (C, 3H) matrix and feed the MXU bf16 operands (f32 accumulate in-kernel).
    w_qkv = jnp.concatenate([w_query.T, w_key.T, w_value.T], axis=1).astype(jnp.bfloat16)
    x_bf16 = x.astype(jnp.bfloat16)

    # TODO(synk): torch's dropout RNG stream cannot be reproduced; the keep-mask
    # is drawn with jax.random in the wrapper (the TPU hardware PRNG primitives
    # have no CPU-interpret lowering, so they cannot be used portably in-kernel).
    if dropout_p > 0.0:
        if rng_key is None:
            rng_key = jax.random.PRNGKey(0)
        keep = jax.random.bernoulli(rng_key, 1.0 - float(dropout_p), (B, T, T))
        keep = keep.astype(jnp.float32)
    else:
        keep = jnp.ones((B, T, T), jnp.float32)

    kernel = functools.partial(_head_kernel, head_size=H, dropout_p=float(dropout_p))
    return pl.pallas_call(
        kernel,
        out_shape=jax.ShapeDtypeStruct((B, T, H), x.dtype),
        grid=(B // Bb,),
        in_specs=[
            pl.BlockSpec((Bb, T, C), lambda b: (b, 0, 0)),       # x block (bf16)
            pl.BlockSpec((C, 3 * H), lambda b: (0, 0)),          # fused W_qkv (bf16)
            pl.BlockSpec((Bb, T, T), lambda b: (b, 0, 0)),       # dropout keep-mask (f32)
        ],
        out_specs=pl.BlockSpec((Bb, T, H), lambda b: (b, 0, 0)),
        compiler_params=pltpu.CompilerParams(
            dimension_semantics=("parallel",)),                  # batch blocks independent
    )(x_bf16, w_qkv, keep)


def init_head_params(key, head_size, n_embd=N_EMBD):
    """Deterministic init mimicking nn.Linear(n_embd, head_size, bias=False)."""
    kk, kq, kv = jax.random.split(key, 3)
    bound = 1.0 / math.sqrt(n_embd)
    w_key = jax.random.uniform(kk, (head_size, n_embd), jnp.float32, -bound, bound)
    w_query = jax.random.uniform(kq, (head_size, n_embd), jnp.float32, -bound, bound)
    w_value = jax.random.uniform(kv, (head_size, n_embd), jnp.float32, -bound, bound)
    return w_key, w_query, w_value


if __name__ == "__main__":
    B, T, C = 2, 8, N_EMBD
    head_size = 16

    root = jax.random.PRNGKey(0)
    k_params, k_x, k_drop = jax.random.split(root, 3)
    w_key, w_query, w_value = init_head_params(k_params, head_size, C)
    x = jax.random.normal(k_x, (B, T, C), dtype=jnp.float32)

    out = head_forward(x, w_key, w_query, w_value, rng_key=k_drop)
    jax.block_until_ready(out)
    assert out.shape == (B, T, head_size)
    assert jnp.all(jnp.isfinite(out))
    print("KERNEL_OK")
</pallas_src>

<mosaic_0001>
module attributes {stable_mosaic.version = 11 : i64} {
  func.func @_head_kernel(%arg0: i32, %arg1: memref<2x8x64xbf16, #tpu.memory_space<vmem>>, %arg2: memref<64x48xbf16, #tpu.memory_space<vmem>>, %arg3: memref<2x8x8xf32, #tpu.memory_space<vmem>>, %arg4: memref<2x8x16xf32, #tpu.memory_space<vmem>>) attributes {dimension_semantics = [#tpu.dimension_semantics<parallel>], iteration_bounds = array<i64: 1>, scalar_prefetch = 0 : i64, scratch_operands = 0 : i64, tpu.core_type = #tpu.core_type<tc>, window_params = [{transform_indices = @transform_0, window_bounds = array<i64: 2, 8, 64>}, {pipeline_mode = #tpu.pipeline_mode<synchronous>, transform_indices = @transform_1, window_bounds = array<i64: 64, 48>}, {transform_indices = @transform_2, window_bounds = array<i64: 2, 8, 8>}, {transform_indices = @transform_3, window_bounds = array<i64: 2, 8, 16>}]} {
    %c0 = arith.constant 0 : index
    %c0_0 = arith.constant 0 : index
    %c0_1 = arith.constant 0 : index
    %0 = vector.load %arg1[%c0, %c0_0, %c0_1] : memref<2x8x64xbf16, #tpu.memory_space<vmem>>, vector<2x8x64xbf16>
    %1 = vector.shape_cast %0 : vector<2x8x64xbf16> to vector<16x64xbf16>
    %c0_2 = arith.constant 0 : index
    %c0_3 = arith.constant 0 : index
    %2 = vector.load %arg2[%c0_2, %c0_3] : memref<64x48xbf16, #tpu.memory_space<vmem>>, vector<64x48xbf16>
    %cst = arith.constant dense<0.000000e+00> : vector<16x48xf32>
    %3 = tpu.matmul %1, %2, %cst {dimension_numbers = #tpu.dot_dimension_numbers<[1], [0], [0], [1], [0, 0, 1, 1], [], []>} : vector<16x64xbf16>, vector<64x48xbf16>, vector<16x48xf32> -> vector<16x48xf32>
    %4 = vector.extract_strided_slice %3 {offsets = [0, 0], sizes = [16, 16], strides = [1, 1]} : vector<16x48xf32> to vector<16x16xf32>
    %5 = vector.shape_cast %4 : vector<16x16xf32> to vector<2x8x16xf32>
    %6 = vector.extract_strided_slice %3 {offsets = [0, 16], sizes = [16, 16], strides = [1, 1]} : vector<16x48xf32> to vector<16x16xf32>
    %7 = vector.shape_cast %6 : vector<16x16xf32> to vector<2x8x16xf32>
    %8 = vector.extract_strided_slice %3 {offsets = [0, 32], sizes = [16, 16], strides = [1, 1]} : vector<16x48xf32> to vector<16x16xf32>
    %9 = vector.shape_cast %8 : vector<16x16xf32> to vector<2x8x16xf32>
    %10 = arith.truncf %5 : vector<2x8x16xf32> to vector<2x8x16xbf16>
    %11 = arith.truncf %7 : vector<2x8x16xf32> to vector<2x8x16xbf16>
    "tpu.trace_start"() <{level = 10 : i32, message = "bqd,bkd->bqk"}> : () -> ()
    %cst_4 = arith.constant dense<0.000000e+00> : vector<2x8x8xf32>
    %12 = tpu.matmul %10, %11, %cst_4 {dimension_numbers = #tpu.dot_dimension_numbers<[2], [2], [1], [1], [0, 0, 0, 1, 1, 1], [0], [0]>} : vector<2x8x16xbf16>, vector<2x8x16xbf16>, vector<2x8x8xf32> -> vector<2x8x8xf32>
    "tpu.trace_stop"() : () -> ()
    %cst_5 = arith.constant 2.500000e-01 : f32
    %13 = vector.broadcast %cst_5 : f32 to vector<2x8x8xf32>
    %14 = arith.mulf %12, %13 : vector<2x8x8xf32>
    %15 = tpu.iota {dimensions = array<i32: 0>} : vector<8x8xi32>
    %16 = tpu.iota {dimensions = array<i32: 1>} : vector<8x8xi32>
    %17 = arith.cmpi sle, %16, %15 : vector<8x8xi32>
    %18 = vector.shape_cast %17 : vector<8x8xi1> to vector<1x8x8xi1>
    %cst_6 = arith.constant -1.000000e+30 : f32
    %19 = vector.shape_cast %18 : vector<1x8x8xi1> to vector<1x8x8xi1>
    %20 = vector.broadcast %19 : vector<1x8x8xi1> to vector<2x8x8xi1>
    %21 = vector.broadcast %cst_6 : f32 to vector<2x8x8xf32>
    %22 = arith.select %20, %14, %21 : vector<2x8x8xi1>, vector<2x8x8xf32>
    %cst_7 = arith.constant dense<0xFF800000> : vector<2x8xf32>
    %23 = vector.multi_reduction <maximumf>, %22, %cst_7 [2] : vector<2x8x8xf32> to vector<2x8xf32>
    %24 = vector.shape_cast %23 : vector<2x8xf32> to vector<2x8x1xf32>
    %25 = vector.broadcast %24 : vector<2x8x1xf32> to vector<2x8x8xf32>
    %26 = arith.subf %22, %25 : vector<2x8x8xf32>
    %27 = math.exp %26 : vector<2x8x8xf32>
    %cst_8 = arith.constant dense<0.000000e+00> : vector<2x8xf32>
    %28 = vector.multi_reduction <add>, %27, %cst_8 [2] : vector<2x8x8xf32> to vector<2x8xf32>
    %29 = vector.shape_cast %28 : vector<2x8xf32> to vector<2x8x1xf32>
    %cst_9 = arith.constant 1.66666663 : f32
    %30 = vector.broadcast %cst_9 : f32 to vector<2x8x1xf32>
    %31 = arith.divf %30, %29 : vector<2x8x1xf32>
    %c0_10 = arith.constant 0 : index
    %c0_11 = arith.constant 0 : index
    %c0_12 = arith.constant 0 : index
    %32 = vector.load %arg3[%c0_10, %c0_11, %c0_12] : memref<2x8x8xf32, #tpu.memory_space<vmem>>, vector<2x8x8xf32>
    %33 = arith.mulf %27, %32 : vector<2x8x8xf32>
    %34 = vector.broadcast %31 : vector<2x8x1xf32> to vector<2x8x8xf32>
    %35 = arith.mulf %33, %34 : vector<2x8x8xf32>
    %36 = arith.truncf %35 : vector<2x8x8xf32> to vector<2x8x8xbf16>
    %37 = arith.truncf %9 : vector<2x8x16xf32> to vector<2x8x16xbf16>
    "tpu.trace_start"() <{level = 10 : i32, message = "bqk,bkd->bqd"}> : () -> ()
    %cst_13 = arith.constant dense<0.000000e+00> : vector<2x8x16xf32>
    %38 = tpu.matmul %36, %37, %cst_13 {dimension_numbers = #tpu.dot_dimension_numbers<[2], [1], [1], [2], [0, 0, 0, 1, 1, 2], [0], [0]>} : vector<2x8x8xbf16>, vector<2x8x16xbf16>, vector<2x8x16xf32> -> vector<2x8x16xf32>
    "tpu.trace_stop"() : () -> ()
    %c0_14 = arith.constant 0 : index
    %c0_15 = arith.constant 0 : index
    %c0_16 = arith.constant 0 : index
    %39 = vector.load %arg4[%c0_14, %c0_15, %c0_16] : memref<2x8x16xf32, #tpu.memory_space<vmem>>, vector<2x8x16xf32>
    tpu.vector_store %arg4[%c0_14, %c0_15, %c0_16], %38 {strides = array<i32>} : memref<2x8x16xf32, #tpu.memory_space<vmem>>, vector<2x8x16xf32>,
    return
  }
  func.func @transform_0(%arg0: i32) -> (i32, i32, i32) {
    %c0_i32 = arith.constant 0 : i32
    %c0_i32_0 = arith.constant 0 : i32
    %c0_i32_1 = arith.constant 0 : i32
    return %arg0, %c0_i32, %c0_i32_0 : i32, i32, i32
  }
  func.func @transform_1(%arg0: i32) -> (i32, i32) {
    %c0_i32 = arith.constant 0 : i32
    %c0_i32_0 = arith.constant 0 : i32
    %c0_i32_1 = arith.constant 0 : i32
    return %c0_i32, %c0_i32_0 : i32, i32
  }
  func.func @transform_2(%arg0: i32) -> (i32, i32, i32) {
    %c0_i32 = arith.constant 0 : i32
    %c0_i32_0 = arith.constant 0 : i32
    %c0_i32_1 = arith.constant 0 : i32
    return %arg0, %c0_i32, %c0_i32_0 : i32, i32, i32
  }
  func.func @transform_3(%arg0: i32) -> (i32, i32, i32) {
    %c0_i32 = arith.constant 0 : i32
    %c0_i32_0 = arith.constant 0 : i32
    %c0_i32_1 = arith.constant 0 : i32
    return %arg0, %c0_i32, %c0_i32_0 : i32, i32, i32
  }
}

</mosaic_0001>

<llo_original>
// kernel: tpu_custom_call.1
$region0: #{tpu_custom_call.1}
  #allocation0 [shape = 'u32[]', space=smem, size = 0x4, offset = 0x4, fixed_abs, tag = 'smem constant byte address 0x4 - core index']
  #allocation1 [shape = 'u32[144,128]{1,0:T(1,128)}', space=vmem, size = 0x12000, scoped, tag = 'internal scratch']
  %s0 = inlined_call_operand.vmem [shape: bf16[2,8,64], index: 0, kind: input, shape index: {}]
  %s1 = inlined_call_operand.vmem [shape: bf16[64,48], index: 1, kind: input, shape index: {}]
  %s2 = inlined_call_operand.vmem [shape: f32[2,8,8], index: 2, kind: input, shape index: {}]
  %s3 = inlined_call_operand.hbm [shape: f32[2,8,16], index: 3, kind: output, shape index: {}]
  %s4 = sld [smem:[#allocation0]]
  $region22: #{tpu_custom_call.1} parent=0
    _
  %s6 = ssub.s32 1, %s4
  %s7 = scalar_select 0, %s6, %s4
  $region1: #{tpu_custom_call.1} parent=0
    #allocation2 [shape = 'u8[8192]{0}', space=vmem, size = 0x2000, scoped, tag = 'output window, operand 0, single buffered']
    #allocation3 [shape = 's32[1]{0}', space=sflag, size = 0x4, scoped, tag = 'scoped memory for tpu_custom_call.1']
    %8 = vsyncpa [#allocation3], 0
    // Predicated region
    $region2: #{tpu_custom_call.1} parent=1 // pred_check
      _
    $region3: #{tpu_custom_call.1} parent=1 // pred_check_branch
      %10 = sbr.rel (0) target = $region5
    $region4: #{tpu_custom_call.1} parent=1 // pred_region
      _
    $region5: #{tpu_custom_call.1} parent=1 // pred_fallthru
      _
    // Predicated region
    $region6: #{tpu_custom_call.1} parent=1 // pred_check
      _
    $region7: #{tpu_custom_call.1} parent=1 // pred_check_branch
      %12 = sbr.rel (0) target = $region9
    $region8: #{tpu_custom_call.1} parent=1 // pred_region
      _
    $region9: #{tpu_custom_call.1} parent=1 // pred_fallthru
      _
    // Predicated region
    $region10: #{tpu_custom_call.1} parent=1 // pred_check
      _
    $region11: #{tpu_custom_call.1} parent=1 // pred_check_branch
      %14 = sbr.rel (0) target = $region13
    $region12: #{tpu_custom_call.1} parent=1 // pred_region
      _
    $region13: #{tpu_custom_call.1} parent=1 // pred_fallthru
      _
    %v16 = vld [vmem:[%s0] sm:$0xf]
    %v17 = vld [vmem:[%s0 + $0x4] sm:$0xf]
    %v18 = vld [vmem:[%s1] sm:$0xf]
    %v19 = vld [vmem:[%s1 + $0x4] sm:$0xf]
    %v20 = vld [vmem:[%s1 + $0x8] sm:$0xf]
    %v21 = vld [vmem:[%s1 + $0xc] sm:$0xf]
    %v22 = vld [vmem:[%s1 + $0x10] sm:$0xf]
    %v23 = vld [vmem:[%s1 + $0x14] sm:$0xf]
    %v24 = vld [vmem:[%s1 + $0x18] sm:$0xf]
    %v25 = vld [vmem:[%s1 + $0x1c] sm:$0xf]
    %v28 = vunpack.c.l.b16 %v16
    %v29 = vunpack.c.l.b16 %v17
    %v30 = vpack.c.b16 %v29, %v28
    %v39 = vunpack.c.l.b16 %v18
    %v40 = vunpack.c.l.b16 %v19
    %v41 = vunpack.c.l.b16 %v20
    %v42 = vunpack.c.l.b16 %v21
    %v43 = vunpack.c.l.b16 %v22
    %v44 = vunpack.c.l.b16 %v23
    %v45 = vunpack.c.l.b16 %v24
    %v46 = vunpack.c.l.b16 %v25
    %v47 = vpack.c.b16 %v40, %v39
    %v48 = vpack.c.b16 %v42, %v41
    %v49 = vpack.c.b16 %v44, %v43
    %v50 = vpack.c.b16 %v46, %v45
    %vm55 = vcmask 523264
    %v57 = vsel %vm55, %v30, 0
    %59 = vmatprep.subr.bf16.mxu0 0
    %60 = vmatpush1.bf16.msra.mxu0 %v47
    %61 = vmatprep.subr.bf16.mxu0 0
    %62 = vmatpush1.bf16.msra.mxu0 %v48
    %63 = vmatprep.subr.bf16.mxu0 0
    %64 = vmatpush1.bf16.msra.mxu0 %v49
    %65 = vmatprep.subr.bf16.mxu0 0
    %66 = vmatpush1.bf16.msra.mxu0 %v50
    %67 = vmatprep.subr.bf16.mxu0 0
    %68 = vmatpush1.bf16.msra.mxu0 0
    %69 = vmatprep.subr.bf16.mxu0 0
    %70 = vmatpush1.bf16.msra.mxu0 0
    %71 = vmatprep.subr.bf16.mxu0 0
    %72 = vmatpush1.bf16.msra.mxu0 0
    %73 = vmatprep.subr.bf16.mxu0 0
    %74 = vmatpush1.bf16.msra.mxu0 0
    %75 = vmatprep.subr.bf16.mxu0 0
    %76 = vmatpush1.bf16.msra.mxu0 0
    %77 = vmatprep.subr.bf16.mxu0 0
    %78 = vmatpush1.bf16.msra.mxu0 0
    %79 = vmatprep.subr.bf16.mxu0 0
    %80 = vmatpush1.bf16.msra.mxu0 0
    %81 = vmatprep.subr.bf16.mxu0 0
    %82 = vmatpush1.bf16.msra.mxu0 0
    %83 = vmatprep.subr.bf16.mxu0 0
    %84 = vmatpush1.bf16.msra.mxu0 0
    %85 = vmatprep.subr.bf16.mxu0 0
    %86 = vmatpush1.bf16.msra.mxu0 0
    %87 = vmatprep.subr.bf16.mxu0 0
    %88 = vmatpush1.bf16.msra.mxu0 0
    %89 = vmatprep.subr.bf16.mxu0 0
    %90 = vmatpush1.bf16.msra.mxu0 0
    %91 = vmatprep.mubr.bf16.mxu0 0
    %92 = vmatmul.mubr.bf16.gmra.mrb[0].mxu0 %v57
    %v93 = vpop.f32.mrb[0].mxu0
    %v94 = vadd.f32 0.0, %v93
    %v95 = vpop.f32.mrb[0].mxu0
    %v96 = vpop.f32.mrb[0].mxu0
    %v97 = vadd.f32 0.0, %v96
    %v98 = vpop.f32.mrb[0].mxu0
    %99 = vdwg.mxu0
    %v100 = vpack.c.bf16 %v94, %v94
    %v101 = vpack.c.bf16 %v97, %v97
    %103 = vrot.lane.b32.xlu0 %v100, 112
    %v104 = vpop.permute.xlu0 %103
    %vm105 = vcmask 130048
    %v107 = vsel %vm105, %v100, 0
    %v110 = vsel %vm105, %v104, 0
    %112 = vmatprep.subr.bf16.mxu0 0
    %113 = vmatpush1.bf16.xpose.msra.mxu0 %v110
    %114 = vmatprep.subr.bf16.mxu0 0
    %115 = vmatpush1.bf16.xpose.msra.mxu0 0
    %116 = vmatprep.subr.bf16.mxu0 0
    %117 = vmatpush1.bf16.xpose.msra.mxu0 0
    %118 = vmatprep.subr.bf16.mxu0 0
    %119 = vmatpush1.bf16.xpose.msra.mxu0 0
    %120 = vmatprep.subr.bf16.mxu0 0
    %121 = vmatpush1.bf16.xpose.msra.mxu0 0
    %122 = vmatprep.subr.bf16.mxu0 0
    %123 = vmatpush1.bf16.xpose.msra.mxu0 0
    %124 = vmatprep.subr.bf16.mxu0 0
    %125 = vmatpush1.bf16.xpose.msra.mxu0 0
    %126 = vmatprep.subr.bf16.mxu0 0
    %127 = vmatpush1.bf16.xpose.msra.mxu0 0
    %128 = vmatprep.subr.bf16.mxu0 0
    %129 = vmatpush1.bf16.xpose.msra.mxu0 0
    %130 = vmatprep.subr.bf16.mxu0 0
    %131 = vmatpush1.bf16.xpose.msra.mxu0 0
    %132 = vmatprep.subr.bf16.mxu0 0
    %133 = vmatpush1.bf16.xpose.msra.mxu0 0
    %134 = vmatprep.subr.bf16.mxu0 0
    %135 = vmatpush1.bf16.xpose.msra.mxu0 0
    %136 = vmatprep.subr.bf16.mxu0 0
    %137 = vmatpush1.bf16.xpose.msra.mxu0 0
    %138 = vmatprep.subr.bf16.mxu0 0
    %139 = vmatpush1.bf16.xpose.msra.mxu0 0
    %140 = vmatprep.subr.bf16.mxu0 0
    %141 = vmatpush1.bf16.xpose.msra.mxu0 0
    %142 = vmatprep.subr.bf16.mxu0 0
    %143 = vmatpush1.bf16.xpose.msra.mxu0 0
    %144 = vmatprep.mubr.bf16.mxu0 0
    %145 = vmatmul.mubr.bf16.gmra.mrb[0].mxu0 %v107
    %v146 = vpop.f32.mrb[0].mxu0
    %v147 = vadd.f32 0.0, %v146
    %v148 = vpop.f32.mrb[0].mxu0
    %v149 = vpop.f32.mrb[0].mxu0
    %v150 = vpop.f32.mrb[0].mxu0
    %151 = vdwg.mxu0
    %153 = vrot.lane.b32.xlu0 %v101, 112
    %v154 = vpop.permute.xlu0 %153
    %v156 = vsel %vm105, %v101, 0
    %v159 = vsel %vm105, %v154, 0
    %161 = vmatprep.subr.bf16.mxu0 0
    %162 = vmatpush1.bf16.xpose.msra.mxu0 %v159
    %163 = vmatprep.subr.bf16.mxu0 0
    %164 = vmatpush1.bf16.xpose.msra.mxu0 0
    %165 = vmatprep.subr.bf16.mxu0 0
    %166 = vmatpush1.bf16.xpose.msra.mxu0 0
    %167 = vmatprep.subr.bf16.mxu0 0
    %168 = vmatpush1.bf16.xpose.msra.mxu0 0
    %169 = vmatprep.subr.bf16.mxu0 0
    %170 = vmatpush1.bf16.xpose.msra.mxu0 0
    %171 = vmatprep.subr.bf16.mxu0 0
    %172 = vmatpush1.bf16.xpose.msra.mxu0 0
    %173 = vmatprep.subr.bf16.mxu0 0
    %174 = vmatpush1.bf16.xpose.msra.mxu0 0
    %175 = vmatprep.subr.bf16.mxu0 0
    %176 = vmatpush1.bf16.xpose.msra.mxu0 0
    %177 = vmatprep.subr.bf16.mxu0 0
    %178 = vmatpush1.bf16.xpose.msra.mxu0 0
    %179 = vmatprep.subr.bf16.mxu0 0
    %180 = vmatpush1.bf16.xpose.msra.mxu0 0
    %181 = vmatprep.subr.bf16.mxu0 0
    %182 = vmatpush1.bf16.xpose.msra.mxu0 0
    %183 = vmatprep.subr.bf16.mxu0 0
    %184 = vmatpush1.bf16.xpose.msra.mxu0 0
    %185 = vmatprep.subr.bf16.mxu0 0
    %186 = vmatpush1.bf16.xpose.msra.mxu0 0
    %187 = vmatprep.subr.bf16.mxu0 0
    %188 = vmatpush1.bf16.xpose.msra.mxu0 0
    %189 = vmatprep.subr.bf16.mxu0 0
    %190 = vmatpush1.bf16.xpose.msra.mxu0 0
    %191 = vmatprep.subr.bf16.mxu0 0
    %192 = vmatpush1.bf16.xpose.msra.mxu0 0
    %193 = vmatprep.mubr.bf16.mxu0 0
    %194 = vmatmul.mubr.bf16.gmra.mrb[0].mxu0 %v156
    %v195 = vpop.f32.mrb[0].mxu0
    %v196 = vadd.f32 0.0, %v195
    %v197 = vpop.f32.mrb[0].mxu0
    %v198 = vpop.f32.mrb[0].mxu0
    %v199 = vpop.f32.mrb[0].mxu0
    %200 = vdwg.mxu0
    %v201 = vmul.f32 %v147, 0.25
    %v202 = vmul.f32 %v196, 0.25
    %v203 = vlaneseq
    %v204 = vshrl.u32 %v203, 7
    %v205 = vlaneseq
    %v206 = vand.u32 %v205, 127
    %vm207 = vcmp.le.s32.totalorder %v206, %v204
    %v208 = vsel %vm207, 1, 0
    %vm209 = vcmp.eq.s32.totalorder %v208, 1
    %v210 = vsel %vm209, %v201, -1e+30
    %v211 = vsel %vm209, %v202, -1e+30
    %vm212 = vcmask 64512
    %v213 = vsel %vm212, %v210, -inf
    %214 = vmax.xlane.f32.xlu0 %v213
    %v215 = vpop.xlane.xlu0 %214
    %v216 = vsel %vm212, %v211, -inf
    %217 = vmax.xlane.f32.xlu0 %v216
    %v218 = vpop.xlane.xlu0 %217
    %v219 = vsub.f32 %v210, %v215
    %v220 = vsub.f32 %v211, %v218
    %v221 = vmul.f32 %v219, 1.442695
    %v222 = vpow.pop %v221
    %v223 = vmul.f32 %v220, 1.442695
    %v224 = vpow.pop %v223
    %v225 = vsel %vm212, %v222, 0.0
    %226 = vadd.xlane.f32.xlu0 %v225
    %v227 = vpop.xlane.xlu0 %226
    %v228 = vsel %vm212, %v224, 0.0
    %229 = vadd.xlane.f32.xlu0 %v228
    %v230 = vpop.xlane.xlu0 %229
    %v231 = vrcp.pop %v227
    %v232 = vmul.f32 1.6666666, %v231
    %v233 = vrcp.pop %v230
    %v234 = vmul.f32 1.6666666, %v233
    %v235 = vld [vmem:[%s2] sm:$0xff]
    %v236 = vld [vmem:[%s2 + $0x8] sm:$0xff]
    %v237 = vmul.f32 %v222, %v235
    %v238 = vmul.f32 %v224, %v236
    %v239 = vmul.f32 %v237, %v232
    %v240 = vmul.f32 %v238, %v234
    %v241 = vpack.c.bf16 %v239, %v239
    %v242 = vpack.c.bf16 %v240, %v240
    %243 = vrot.lane.b32.xlu0 %v100, 96
    %v244 = vpop.permute.xlu0 %243
    %v246 = vsel %vm212, %v241, 0
    %vm248 = vcmask 1043456
    %v250 = vsel %vm248, %v244, 0
    %252 = vmatprep.subr.bf16.mxu0 0
    %253 = vmatpush1.bf16.msra.mxu0 %v250
    %254 = vmatprep.subr.bf16.mxu0 0
    %255 = vmatpush1.bf16.msra.mxu0 0
    %256 = vmatprep.subr.bf16.mxu0 0
    %257 = vmatpush1.bf16.msra.mxu0 0
    %258 = vmatprep.subr.bf16.mxu0 0
    %259 = vmatpush1.bf16.msra.mxu0 0
    %260 = vmatprep.subr.bf16.mxu0 0
    %261 = vmatpush1.bf16.msra.mxu0 0
    %262 = vmatprep.subr.bf16.mxu0 0
    %263 = vmatpush1.bf16.msra.mxu0 0
    %264 = vmatprep.subr.bf16.mxu0 0
    %265 = vmatpush1.bf16.msra.mxu0 0
    %266 = vmatprep.subr.bf16.mxu0 0
    %267 = vmatpush1.bf16.msra.mxu0 0
    %268 = vmatprep.subr.bf16.mxu0 0
    %269 = vmatpush1.bf16.msra.mxu0 0
    %270 = vmatprep.subr.bf16.mxu0 0
    %271 = vmatpush1.bf16.msra.mxu0 0
    %272 = vmatprep.subr.bf16.mxu0 0
    %273 = vmatpush1.bf16.msra.mxu0 0
    %274 = vmatprep.subr.bf16.mxu0 0
    %275 = vmatpush1.bf16.msra.mxu0 0
    %276 = vmatprep.subr.bf16.mxu0 0
    %277 = vmatpush1.bf16.msra.mxu0 0
    %278 = vmatprep.subr.bf16.mxu0 0
    %279 = vmatpush1.bf16.msra.mxu0 0
    %280 = vmatprep.subr.bf16.mxu0 0
    %281 = vmatpush1.bf16.msra.mxu0 0
    %282 = vmatprep.subr.bf16.mxu0 0
    %283 = vmatpush1.bf16.msra.mxu0 0
    %284 = vmatprep.mubr.bf16.mxu0 0
    %285 = vmatmul.mubr.bf16.gmra.mrb[0].mxu0 %v246
    %v286 = vpop.f32.mrb[0].mxu0
    %v287 = vadd.f32 0.0, %v286
    %v288 = vpop.f32.mrb[0].mxu0
    %v289 = vpop.f32.mrb[0].mxu0
    %v290 = vpop.f32.mrb[0].mxu0
    %291 = vdwg.mxu0
    %292 = vrot.lane.b32.xlu0 %v101, 96
    %v293 = vpop.permute.xlu0 %292
    %v295 = vsel %vm212, %v242, 0
    %v298 = vsel %vm248, %v293, 0
    %300 = vmatprep.subr.bf16.mxu0 0
    %301 = vmatpush1.bf16.msra.mxu0 %v298
    %302 = vmatprep.subr.bf16.mxu0 0
    %303 = vmatpush1.bf16.msra.mxu0 0
    %304 = vmatprep.subr.bf16.mxu0 0
    %305 = vmatpush1.bf16.msra.mxu0 0
    %306 = vmatprep.subr.bf16.mxu0 0
    %307 = vmatpush1.bf16.msra.mxu0 0
    %308 = vmatprep.subr.bf16.mxu0 0
    %309 = vmatpush1.bf16.msra.mxu0 0
    %310 = vmatprep.subr.bf16.mxu0 0
    %311 = vmatpush1.bf16.msra.mxu0 0
    %312 = vmatprep.subr.bf16.mxu0 0
    %313 = vmatpush1.bf16.msra.mxu0 0
    %314 = vmatprep.subr.bf16.mxu0 0
    %315 = vmatpush1.bf16.msra.mxu0 0
    %316 = vmatprep.subr.bf16.mxu0 0
    %317 = vmatpush1.bf16.msra.mxu0 0
    %318 = vmatprep.subr.bf16.mxu0 0
    %319 = vmatpush1.bf16.msra.mxu0 0
    %320 = vmatprep.subr.bf16.mxu0 0
    %321 = vmatpush1.bf16.msra.mxu0 0
    %322 = vmatprep.subr.bf16.mxu0 0
    %323 = vmatpush1.bf16.msra.mxu0 0
    %324 = vmatprep.subr.bf16.mxu0 0
    %325 = vmatpush1.bf16.msra.mxu0 0
    %326 = vmatprep.subr.bf16.mxu0 0
    %327 = vmatpush1.bf16.msra.mxu0 0
    %328 = vmatprep.subr.bf16.mxu0 0
    %329 = vmatpush1.bf16.msra.mxu0 0
    %330 = vmatprep.subr.bf16.mxu0 0
    %331 = vmatpush1.bf16.msra.mxu0 0
    %332 = vmatprep.mubr.bf16.mxu0 0
    %333 = vmatmul.mubr.bf16.gmra.mrb[0].mxu0 %v295
    %v334 = vpop.f32.mrb[0].mxu0
    %v335 = vadd.f32 0.0, %v334
    %v336 = vpop.f32.mrb[0].mxu0
    %v337 = vpop.f32.mrb[0].mxu0
    %v338 = vpop.f32.mrb[0].mxu0
    %339 = vdwg.mxu0
    %340 = vst.msk [vmem:[#allocation2] sm:$0xff] %vm105, %v287
    %341 = vst.msk [vmem:[#allocation2 + $0x8] sm:$0xff] %vm105, %v335
    // Predicated region
    $region14: #{tpu_custom_call.1} parent=1 // pred_check
      _
    $region15: #{tpu_custom_call.1} parent=1 // pred_check_branch
      %343 = sbr.rel (0) target = $region17
    $region16: #{tpu_custom_call.1} parent=1 // pred_region
      %s345 = ssub.s32 256, 256
      %346 = vsyncadd [#allocation3], %s345
      %s347 = sshll.u32 [#allocation2], 4
      %s348 = int_to_ptr.vmem [resolvable:$true] %s347
      %353 = dma.vmem_to_hbm [thread:$0]  %s348, 256, %s3, [#allocation3], 128, 128, 8
    $region17: #{tpu_custom_call.1} parent=1 // pred_fallthru
      _
    // Predicated region
    $region18: #{tpu_custom_call.1} parent=1 // pred_check
      _
    $region19: #{tpu_custom_call.1} parent=1 // pred_check_branch
      %355 = sbr.rel (0) target = $region21
    $region20: #{tpu_custom_call.1} parent=1 // pred_region
      %356 = dma.done [#allocation3], 256
    $region21: #{tpu_custom_call.1} parent=1 // pred_fallthru
      _
    %357 = vsyncpa [#allocation3], 1

</llo_original>
